<compile_context>
chip_gen: v7x
topology: tpu7x:2x2x1
jax: 0.10.0
libtpu: 0.0.40
codegen_flags: <defaults>
</compile_context>

<pallas_src>
import functools

import jax
import jax.numpy as jnp
from jax.experimental import pallas as pl
from jax.experimental.pallas import tpu as pltpu


_LANES = 128       # vreg lane width
_SUBLANES = 8      # f32 vreg sublane count
_GATE_PERM = (0, 1, 3, 2)   # torch LSTMCell gate order (i, f, g, o) -> kernel (i, f, o, g)


def _round_up(x, m):
    return ((x + m - 1) // m) * m


# -----------------------------------------------------------------------------
# Kernel 1: a single controller step (== SearchController.forward)
# -----------------------------------------------------------------------------
def _forward_kernel(x_ref, h_ref, c_ref, wih_ref, whh_ref, b_ref, wdec_ref, bdec_ref,
                    logits_ref, hx_ref, cx_ref, *, tanh_c, train_mode, H):
    # LSTMCell: gates = x @ W_ih^T + h @ W_hh^T + (b_ih + b_hh), gate order (i,f,o,g)
    gates = (jnp.dot(x_ref[...], wih_ref[...], preferred_element_type=jnp.float32)
             + jnp.dot(h_ref[...], whh_ref[...], preferred_element_type=jnp.float32)
             + b_ref[...])
    sig = jax.nn.sigmoid(gates[:, 0:3 * H])          # (i, f, o) slab
    i_g = sig[:, 0 * H:1 * H]
    f_g = sig[:, 1 * H:2 * H]
    o_g = sig[:, 2 * H:3 * H]
    g_g = jnp.tanh(gates[:, 3 * H:4 * H])

    cx = f_g * c_ref[...] + i_g * g_g
    hx = o_g * jnp.tanh(cx)

    # Decoder (1/softmax_temperature already folded into wdec/bdec).
    logits = jnp.dot(hx, wdec_ref[...], preferred_element_type=jnp.float32) + bdec_ref[...]
    if train_mode:
        logits = tanh_c * jnp.tanh(logits)

    logits_ref[...] = logits
    hx_ref[...] = hx
    cx_ref[...] = cx


def search_controller_forward(inputs, hidden, kparams, action_name, *,
                              tanh_c=2.5, mode="train"):
    """One controller step.  softmax_temperature is folded into kparams."""
    h, c = hidden
    B, H = inputs.shape
    Sp = kparams["Sp"]
    Bp = _round_up(B, _SUBLANES)
    a_idx = kparams["action_index"][action_name]
    S = kparams["sizes"][a_idx]

    pad = lambda a: jnp.pad(a, ((0, Bp - B), (0, 0)))

    kernel = functools.partial(_forward_kernel, tanh_c=float(tanh_c),
                               train_mode=(mode == "train"), H=H)
    vmem = pl.BlockSpec(memory_space=pltpu.MemorySpace.VMEM)
    logits_p, hx_p, cx_p = pl.pallas_call(
        kernel,
        out_shape=(
            jax.ShapeDtypeStruct((Bp, Sp), jnp.float32),
            jax.ShapeDtypeStruct((Bp, H), jnp.float32),
            jax.ShapeDtypeStruct((Bp, H), jnp.float32),
        ),
        in_specs=[vmem] * 8,
        out_specs=(vmem, vmem, vmem),
    )(pad(inputs), pad(h), pad(c),
      kparams["w_ih_p"], kparams["w_hh_p"], kparams["b_cat"],
      kparams["wdec_all"][a_idx], kparams["bdec_all"][a_idx])

    return logits_p[:B, :S], (hx_p[:B], cx_p[:B])


# -----------------------------------------------------------------------------
# Kernel 2: the whole sample() rollout fused into ONE un-gridded pallas_call
# -----------------------------------------------------------------------------
def _sample_kernel(gum_ref, wih_ref, whh_ref, b_ref, wdec_ref, bdec_ref, enc_ref,
                   logits_ref, act_ref, logp_ref, ent_ref, hx_ref, cx_ref,
                   *, tanh_c, train_mode, H, dec_ids, sizes, tok_offsets):
    T, Bp, Sp = logits_ref.shape
    Tp = enc_ref.shape[0]
    neg = jnp.float32(-1e30)

    col = jax.lax.broadcasted_iota(jnp.int32, (Bp, Sp), 1)      # hoisted out of the loop
    row_tok = jax.lax.broadcasted_iota(jnp.int32, (Bp, Tp), 1)

    # sample() starts from zero inputs and a zero hidden state.
    x = jnp.zeros((Bp, H), jnp.float32)
    h = jnp.zeros((Bp, H), jnp.float32)
    c = jnp.zeros((Bp, H), jnp.float32)

    # Statically unrolled decode loop (T is small and fixed per controller).
    for t in range(T):
        d = dec_ids[t]            # static decoder index for this step
        s = sizes[t]              # static number of valid options
        off = tok_offsets[t]      # static token offset into the embedding table

        # ---- LSTMCell (compact gate packing: [Bp, 4*H] in one lane block) ----
        gates = (jnp.dot(x, wih_ref[...], preferred_element_type=jnp.float32)
                 + jnp.dot(h, whh_ref[...], preferred_element_type=jnp.float32)
                 + b_ref[...])
        sig = jax.nn.sigmoid(gates[:, 0:3 * H])
        i_g = sig[:, 0 * H:1 * H]
        f_g = sig[:, 1 * H:2 * H]
        o_g = sig[:, 2 * H:3 * H]
        g_g = jnp.tanh(gates[:, 3 * H:4 * H])
        c = f_g * c + i_g * g_g
        h = o_g * jnp.tanh(c)

        # ---- per-step decoder (static index -> zero-cost ref view) ----------
        logits = jnp.dot(h, wdec_ref[d], preferred_element_type=jnp.float32) + bdec_ref[d]
        if train_mode:
            logits = tanh_c * jnp.tanh(logits)

        # ---- fused masked log-softmax / entropy over the valid columns ------
        valid = col < s
        mlogits = jnp.where(valid, logits, neg)
        m = jnp.max(mlogits, axis=-1, keepdims=True)
        e = jnp.where(valid, jnp.exp(logits - m), 0.0)
        z = jnp.sum(e, axis=-1, keepdims=True)
        logz = jnp.log(z)
        logp = logits - m - logz                 # only ever read where `valid`
        probs = e * (1.0 / z)
        ent = -jnp.sum(jnp.where(valid, logp, 0.0) * probs, axis=-1, keepdims=True)

        # ---- multinomial sampling: Gumbel-max over the valid columns --------
        score = jnp.where(valid, logits + gum_ref[t], neg)
        mx = jnp.max(score, axis=-1, keepdims=True)
        action = jnp.min(jnp.where(score == mx, col, Sp), axis=-1, keepdims=True)  # [Bp,1]
        sel_logp = jnp.sum(jnp.where(col == action, logp, 0.0), axis=-1, keepdims=True)

        logits_ref[t] = logits
        act_ref[t] = jnp.broadcast_to(action, (Bp, Sp))
        logp_ref[t] = jnp.broadcast_to(sel_logp, (Bp, Sp))
        ent_ref[t] = jnp.broadcast_to(ent, (Bp, Sp))

        # ---- next-step input: embedding lookup as one-hot @ encoder (MXU) ---
        tok = action + off
        onehot = (row_tok == tok).astype(jnp.float32)
        x = jnp.dot(onehot, enc_ref[...], preferred_element_type=jnp.float32)

    # Final hidden state, written once.
    hx_ref[...] = h
    cx_ref[...] = c


def search_controller_sample(key, kparams, search_space, action_list, batch_size=1,
                             *, tanh_c=2.5, mode="train"):
    """Full sample() rollout in one pallas_call.

    Returns (actions [B, T], log_probs [T*B], entropies [T*B], (hx, cx), logits_steps).
    """
    if batch_size < 1:
        raise ValueError(f"Wrong batch_size: {batch_size} < 1")
    H, Sp = kparams["H"], kparams["Sp"]
    T = len(action_list)
    B = batch_size
    Bp = _round_up(B, _SUBLANES)

    a_ids = [kparams["action_index"][a] for a in action_list]
    step_sizes = tuple(kparams["sizes"][i] for i in a_ids)
    tok_off = tuple(kparams["tok_offsets"][i] for i in a_ids)

    # TODO(synk): torch's probs.multinomial RNG stream is not reproduced; the
    # in-kernel Gumbel-max sample below is distributionally equivalent.
    gumbel = jax.random.gumbel(key, (T, Bp, Sp), jnp.float32)

    kernel = functools.partial(
        _sample_kernel, tanh_c=float(tanh_c), train_mode=(mode == "train"),
        H=H, dec_ids=tuple(a_ids), sizes=step_sizes, tok_offsets=tok_off)

    vmem = pl.BlockSpec(memory_space=pltpu.MemorySpace.VMEM)
    logits_all, act_all, logp_all, ent_all, hx, cx = pl.pallas_call(
        kernel,
        out_shape=(
            jax.ShapeDtypeStruct((T, Bp, Sp), jnp.float32),   # logits per step
            jax.ShapeDtypeStruct((T, Bp, Sp), jnp.int32),     # sampled action (broadcast)
            jax.ShapeDtypeStruct((T, Bp, Sp), jnp.float32),   # selected log-prob (broadcast)
            jax.ShapeDtypeStruct((T, Bp, Sp), jnp.float32),   # entropy (broadcast)
            jax.ShapeDtypeStruct((Bp, H), jnp.float32),       # final hx
            jax.ShapeDtypeStruct((Bp, H), jnp.float32),       # final cx
        ),
        in_specs=[vmem] * 7,
        out_specs=(vmem,) * 6,
    )(gumbel, kparams["w_ih_p"], kparams["w_hh_p"], kparams["b_cat"],
      kparams["wdec_all"], kparams["bdec_all"], kparams["encoder"])

    actions_tb = act_all[:, :B, 0]                              # [T, B]
    log_probs = logp_all[:, :B, 0].reshape(-1)                  # step-major, matches torch.cat
    entropies = ent_all[:, :B, 0].reshape(-1)
    logits_steps = [logits_all[t, :B, :step_sizes[t]] for t in range(T)]

    return (actions_tb.T, log_probs, entropies, (hx[:B], cx[:B]), logits_steps)


# -----------------------------------------------------------------------------
# Parameters: raw (torch layout) + one-time preprocessing for the kernels
# -----------------------------------------------------------------------------
def init_controller_params(key, search_space, controller_hid):
    """Raw params in torch layout.  reset_parameters(): U(-0.1, 0.1), decoder bias = 0."""
    H = controller_hid
    num_tokens = [len(v) for v in search_space.values()]
    num_total_tokens = sum(num_tokens)
    init_range = 0.1
    keys = jax.random.split(key, 5 + len(search_space))
    uni = lambda k, shape: jax.random.uniform(k, shape, jnp.float32,
                                              minval=-init_range, maxval=init_range)
    params = {
        "encoder": uni(keys[0], (num_total_tokens, H)),          # Embedding table
        "w_ih_t": uni(keys[1], (H, 4 * H)),                      # LSTMCell W_ih^T, gates (i, f, g, o)
        "w_hh_t": uni(keys[2], (H, 4 * H)),
        "b_ih": uni(keys[3], (1, 4 * H)),
        "b_hh": uni(keys[4], (1, 4 * H)),
        "decoders": {},
    }
    for i, (name, options) in enumerate(search_space.items()):
        size = len(options)
        params["decoders"][name] = {
            "w_t": uni(keys[5 + i], (H, size)),
            "b": jnp.zeros((1, size), jnp.float32),              # bias.data.fill_(0)
        }
    return params


def _pack_gate_cols(w, H, Gp):
    """[rows, 4H] torch gate order (i,f,g,o) -> [rows, Gp] kernel order (i,f,o,g), gate stride H."""
    rows = w.shape[0]
    out = jnp.zeros((rows, Gp), jnp.float32)
    for dst, src in enumerate(_GATE_PERM):
        out = out.at[:, dst * H:(dst + 1) * H].set(w[:, src * H:(src + 1) * H])
    return out


def prepare_kernel_params(raw, search_space, controller_hid, softmax_temperature=5.0):
    """One-time preprocessing: fuse / fold / pad parameters for the kernels (compact layout)."""
    H = controller_hid
    Gp = _round_up(4 * H, _LANES)                  # H=32 -> 128, i.e. no gate padding at all
    names = list(search_space.keys())
    sizes = [len(search_space[k]) for k in names]
    A = len(names)
    Sp = _round_up(max(sizes), _LANES)
    num_total_tokens = sum(sizes)
    Tp = _round_up(num_total_tokens, _LANES)

    w_ih_p = _pack_gate_cols(raw["w_ih_t"], H, Gp)               # [H, Gp]
    w_hh_p = _pack_gate_cols(raw["w_hh_t"], H, Gp)               # [H, Gp]
    b_cat = _pack_gate_cols(raw["b_ih"] + raw["b_hh"], H, Gp)    # [1, Gp], biases folded

    inv_temp = 1.0 / float(softmax_temperature)                  # temperature folded
    wdec_all = jnp.zeros((A, H, Sp), jnp.float32)
    bdec_all = jnp.zeros((A, 1, Sp), jnp.float32)
    for i, name in enumerate(names):
        s = sizes[i]
        wdec_all = wdec_all.at[i, :, :s].set(raw["decoders"][name]["w_t"] * inv_temp)
        bdec_all = bdec_all.at[i, :, :s].set(raw["decoders"][name]["b"] * inv_temp)

    encoder = jnp.zeros((Tp, H), jnp.float32).at[:num_total_tokens, :].set(raw["encoder"])

    return {
        "H": H, "Gp": Gp, "Sp": Sp, "Tp": Tp,
        "names": names, "sizes": sizes,
        "action_index": {n: i for i, n in enumerate(names)},
        "tok_offsets": [int(sum(sizes[:i])) for i in range(A)],
        "softmax_temperature": float(softmax_temperature),
        "w_ih_p": w_ih_p, "w_hh_p": w_hh_p, "b_cat": b_cat,
        "wdec_all": wdec_all, "bdec_all": bdec_all,
        "encoder": encoder,
    }


# -----------------------------------------------------------------------------
# Pure-JAX references (torch-layout math) for correctness checks
# -----------------------------------------------------------------------------
def _reference_forward(inputs, hidden, raw, action_name, *,
                       softmax_temperature=5.0, tanh_c=2.5, mode="train"):
    h, c = hidden
    H = inputs.shape[1]
    gates = (inputs @ raw["w_ih_t"] + raw["b_ih"] + h @ raw["w_hh_t"] + raw["b_hh"])
    i_g = jax.nn.sigmoid(gates[:, 0 * H:1 * H])
    f_g = jax.nn.sigmoid(gates[:, 1 * H:2 * H])
    g_g = jnp.tanh(gates[:, 2 * H:3 * H])
    o_g = jax.nn.sigmoid(gates[:, 3 * H:4 * H])
    cx = f_g * c + i_g * g_g
    hx = o_g * jnp.tanh(cx)
    dec = raw["decoders"][action_name]
    logits = (hx @ dec["w_t"] + dec["b"]) / softmax_temperature
    if mode == "train":
        logits = tanh_c * jnp.tanh(logits)
    return logits, (hx, cx)


def _reference_rollout(raw, search_space, action_list, actions_tb, *,
                       softmax_temperature=5.0, tanh_c=2.5, mode="train"):
    """Teacher-forced sample() rollout with the given per-step actions (pure JAX)."""
    names = list(search_space.keys())
    sizes = [len(search_space[k]) for k in names]
    H = raw["w_ih_t"].shape[0]
    B = actions_tb.shape[1]
    x = jnp.zeros((B, H), jnp.float32)
    h = jnp.zeros((B, H), jnp.float32)
    c = jnp.zeros((B, H), jnp.float32)
    logits_steps = []
    for t, action_name in enumerate(action_list):
        logits, (h, c) = _reference_forward(
            x, (h, c), raw, action_name,
            softmax_temperature=softmax_temperature, tanh_c=tanh_c, mode=mode)
        logits_steps.append(logits)
        d = names.index(action_name)
        tok = actions_tb[t] + sum(sizes[:d])
        x = raw["encoder"][tok]
    return logits_steps, (h, c)


def construct_actions(actions_bt, search_space, action_list):
    """Equivalent of SearchController._construct_action (host-side Python)."""
    structures = []
    for row in actions_bt.tolist():
        structures.append([search_space[name][a] for a, name in zip(row, action_list)])
    return structures


if __name__ == "__main__":
    search_space = {
        "attention_type": ["gat", "gcn", "cos", "const", "gat_sym", "linear"],
        "aggregator_type": ["sum", "mean", "max", "mlp"],
        "activate_function": ["sigmoid", "tanh", "relu", "elu", "leaky_relu"],
        "number_of_heads": [1, 2, 4, 8],
        "hidden_units": [8, 16, 32, 64, 128],
    }
    action_list = list(search_space.keys())
    batch = 2
    controller_hid = 32
    softmax_temperature = 5.0
    tanh_c = 2.5

    key = jax.random.PRNGKey(0)
    pkey, xkey, hkey, ckey, skey = jax.random.split(key, 5)
    raw = init_controller_params(pkey, search_space, controller_hid)
    kparams = prepare_kernel_params(raw, search_space, controller_hid,
                                    softmax_temperature=softmax_temperature)

    # ---- 1) single-step forward() kernel vs pure-JAX reference --------------
    action_name = "attention_type"
    inputs = jax.random.normal(xkey, (batch, controller_hid), jnp.float32) * 0.1
    h0 = jax.random.normal(hkey, (batch, controller_hid), jnp.float32) * 0.1
    c0 = jax.random.normal(ckey, (batch, controller_hid), jnp.float32) * 0.1

    logits, (hx, cx) = search_controller_forward(
        inputs, (h0, c0), kparams, action_name, tanh_c=tanh_c, mode="train")
    jax.block_until_ready((logits, hx, cx))

    ref_logits, (ref_hx, ref_cx) = _reference_forward(
        inputs, (h0, c0), raw, action_name,
        softmax_temperature=softmax_temperature, tanh_c=tanh_c, mode="train")
    assert logits.shape == (batch, len(search_space[action_name]))
    assert hx.shape == (batch, controller_hid) and cx.shape == (batch, controller_hid)
    # tolerance covers TPU matmul default-precision variation + temperature folding
    assert jnp.allclose(logits, ref_logits, atol=5e-4), "single-step logits mismatch"
    assert jnp.allclose(hx, ref_hx, atol=5e-4), "single-step hx mismatch"
    assert jnp.allclose(cx, ref_cx, atol=5e-4), "single-step cx mismatch"

    # ---- 2) fused sample() rollout kernel ------------------------------------
    actions_bt, log_probs, entropies, (hx_f, cx_f), logits_steps = \
        search_controller_sample(skey, kparams, search_space, action_list, batch,
                                 tanh_c=tanh_c, mode="train")
    jax.block_until_ready((actions_bt, log_probs, entropies, hx_f, cx_f))

    T = len(action_list)
    assert actions_bt.shape == (batch, T)
    assert log_probs.shape == (T * batch,) and entropies.shape == (T * batch,)
    actions_tb = actions_bt.T                                    # [T, B]

    # sampled actions must be valid and consistent with Gumbel-max on the logits
    Bp = _round_up(batch, _SUBLANES)
    gumbel = jax.random.gumbel(skey, (T, Bp, kparams["Sp"]), jnp.float32)
    for t, name in enumerate(action_list):
        s = len(search_space[name])
        assert int(actions_tb[t].min()) >= 0 and int(actions_tb[t].max()) < s
        ref_act = jnp.argmax(logits_steps[t] + gumbel[t, :batch, :s], axis=-1)
        assert jnp.array_equal(ref_act.astype(jnp.int32), actions_tb[t]), \
            f"sampled action mismatch at step {t}"

    # in-kernel log-prob / entropy must match host-side log_softmax math
    ref_lp, ref_en = [], []
    for t in range(T):
        lg = logits_steps[t]
        lp = jax.nn.log_softmax(lg, axis=-1)
        pr = jnp.exp(lp)
        ref_en.append(-(lp * pr).sum(axis=-1))
        ref_lp.append(jnp.take_along_axis(lp, actions_tb[t][:, None], axis=-1)[:, 0])
    assert jnp.allclose(log_probs, jnp.concatenate(ref_lp), atol=5e-4), "log_prob mismatch"
    assert jnp.allclose(entropies, jnp.concatenate(ref_en), atol=5e-4), "entropy mismatch"

    # teacher-forced pure-JAX rollout with the sampled actions must reproduce
    # the per-step logits and the final hidden state
    ref_logits_steps, (ref_hx_f, ref_cx_f) = _reference_rollout(
        raw, search_space, action_list, actions_tb,
        softmax_temperature=softmax_temperature, tanh_c=tanh_c, mode="train")
    for t in range(T):
        assert jnp.allclose(logits_steps[t], ref_logits_steps[t], atol=5e-4), \
            f"rollout logits mismatch at step {t}"
    assert jnp.allclose(hx_f, ref_hx_f, atol=1e-3), "rollout final hx mismatch"
    assert jnp.allclose(cx_f, ref_cx_f, atol=1e-3), "rollout final cx mismatch"

    # exercise the structure construction (== _construct_action)
    dags = construct_actions(actions_bt, search_space, action_list)
    assert len(dags) == batch and len(dags[0]) == T

    print("KERNEL_OK")
</pallas_src>

<mosaic_0001>
module attributes {stable_mosaic.version = 11 : i64} {
  func.func @_forward_kernel(%arg0: memref<8x32xf32, #tpu.memory_space<vmem>>, %arg1: memref<8x32xf32, #tpu.memory_space<vmem>>, %arg2: memref<8x32xf32, #tpu.memory_space<vmem>>, %arg3: memref<32x128xf32, #tpu.memory_space<vmem>>, %arg4: memref<32x128xf32, #tpu.memory_space<vmem>>, %arg5: memref<1x128xf32, #tpu.memory_space<vmem>>, %arg6: memref<32x128xf32, #tpu.memory_space<vmem>>, %arg7: memref<1x128xf32, #tpu.memory_space<vmem>>, %arg8: memref<8x128xf32, #tpu.memory_space<vmem>>, %arg9: memref<8x32xf32, #tpu.memory_space<vmem>>, %arg10: memref<8x32xf32, #tpu.memory_space<vmem>>) attributes {dimension_semantics = [], scalar_prefetch = 0 : i64, scratch_operands = 0 : i64, tpu.core_type = #tpu.core_type<tc>} {
    %c0 = arith.constant 0 : index
    %c0_0 = arith.constant 0 : index
    %0 = vector.load %arg0[%c0, %c0_0] : memref<8x32xf32, #tpu.memory_space<vmem>>, vector<8x32xf32>
    %c0_1 = arith.constant 0 : index
    %c0_2 = arith.constant 0 : index
    %1 = vector.load %arg3[%c0_1, %c0_2] : memref<32x128xf32, #tpu.memory_space<vmem>>, vector<32x128xf32>
    %cst = arith.constant dense<0.000000e+00> : vector<8x128xf32>
    %2 = tpu.matmul %0, %1, %cst {dimension_numbers = #tpu.dot_dimension_numbers<[1], [0], [0], [1], [0, 0, 1, 1], [], []>} : vector<8x32xf32>, vector<32x128xf32>, vector<8x128xf32> -> vector<8x128xf32>
    %c0_3 = arith.constant 0 : index
    %c0_4 = arith.constant 0 : index
    %3 = vector.load %arg1[%c0_3, %c0_4] : memref<8x32xf32, #tpu.memory_space<vmem>>, vector<8x32xf32>
    %c0_5 = arith.constant 0 : index
    %c0_6 = arith.constant 0 : index
    %4 = vector.load %arg4[%c0_5, %c0_6] : memref<32x128xf32, #tpu.memory_space<vmem>>, vector<32x128xf32>
    %cst_7 = arith.constant dense<0.000000e+00> : vector<8x128xf32>
    %5 = tpu.matmul %3, %4, %cst_7 {dimension_numbers = #tpu.dot_dimension_numbers<[1], [0], [0], [1], [0, 0, 1, 1], [], []>} : vector<8x32xf32>, vector<32x128xf32>, vector<8x128xf32> -> vector<8x128xf32>
    %6 = arith.addf %2, %5 : vector<8x128xf32>
    %c0_8 = arith.constant 0 : index
    %c0_9 = arith.constant 0 : index
    %7 = vector.load %arg5[%c0_8, %c0_9] : memref<1x128xf32, #tpu.memory_space<vmem>>, vector<1x128xf32>
    %8 = vector.broadcast %7 : vector<1x128xf32> to vector<8x128xf32>
    %9 = arith.addf %6, %8 : vector<8x128xf32>
    %10 = vector.extract_strided_slice %9 {offsets = [0, 0], sizes = [8, 96], strides = [1, 1]} : vector<8x128xf32> to vector<8x96xf32>
    %11 = arith.negf %10 : vector<8x96xf32>
    %12 = math.exp %11 : vector<8x96xf32>
    %cst_10 = arith.constant 1.000000e+00 : f32
    %13 = vector.broadcast %cst_10 : f32 to vector<8x96xf32>
    %14 = arith.addf %13, %12 : vector<8x96xf32>
    %15 = arith.divf %13, %14 : vector<8x96xf32>
    %16 = vector.extract_strided_slice %15 {offsets = [0, 0], sizes = [8, 32], strides = [1, 1]} : vector<8x96xf32> to vector<8x32xf32>
    %17 = vector.extract_strided_slice %15 {offsets = [0, 32], sizes = [8, 32], strides = [1, 1]} : vector<8x96xf32> to vector<8x32xf32>
    %18 = vector.extract_strided_slice %15 {offsets = [0, 64], sizes = [8, 32], strides = [1, 1]} : vector<8x96xf32> to vector<8x32xf32>
    %19 = vector.extract_strided_slice %9 {offsets = [0, 96], sizes = [8, 32], strides = [1, 1]} : vector<8x128xf32> to vector<8x32xf32>
    %20 = math.tanh %19 : vector<8x32xf32>
    %c0_11 = arith.constant 0 : index
    %c0_12 = arith.constant 0 : index
    %21 = vector.load %arg2[%c0_11, %c0_12] : memref<8x32xf32, #tpu.memory_space<vmem>>, vector<8x32xf32>
    %22 = arith.mulf %17, %21 : vector<8x32xf32>
    %23 = arith.mulf %16, %20 : vector<8x32xf32>
    %24 = arith.addf %22, %23 : vector<8x32xf32>
    %25 = math.tanh %24 : vector<8x32xf32>
    %26 = arith.mulf %18, %25 : vector<8x32xf32>
    %c0_13 = arith.constant 0 : index
    %c0_14 = arith.constant 0 : index
    %27 = vector.load %arg6[%c0_13, %c0_14] : memref<32x128xf32, #tpu.memory_space<vmem>>, vector<32x128xf32>
    %cst_15 = arith.constant dense<0.000000e+00> : vector<8x128xf32>
    %28 = tpu.matmul %26, %27, %cst_15 {dimension_numbers = #tpu.dot_dimension_numbers<[1], [0], [0], [1], [0, 0, 1, 1], [], []>} : vector<8x32xf32>, vector<32x128xf32>, vector<8x128xf32> -> vector<8x128xf32>
    %c0_16 = arith.constant 0 : index
    %c0_17 = arith.constant 0 : index
    %29 = vector.load %arg7[%c0_16, %c0_17] : memref<1x128xf32, #tpu.memory_space<vmem>>, vector<1x128xf32>
    %30 = vector.broadcast %29 : vector<1x128xf32> to vector<8x128xf32>
    %31 = arith.addf %28, %30 : vector<8x128xf32>
    %32 = math.tanh %31 : vector<8x128xf32>
    %cst_18 = arith.constant 2.500000e+00 : f32
    %33 = vector.broadcast %cst_18 : f32 to vector<8x128xf32>
    %34 = arith.mulf %33, %32 : vector<8x128xf32>
    %c0_19 = arith.constant 0 : index
    %c0_20 = arith.constant 0 : index
    %35 = vector.load %arg8[%c0_19, %c0_20] : memref<8x128xf32, #tpu.memory_space<vmem>>, vector<8x128xf32>
    tpu.vector_store %arg8[%c0_19, %c0_20], %34 {strides = array<i32>} : memref<8x128xf32, #tpu.memory_space<vmem>>, vector<8x128xf32>,
    %c0_21 = arith.constant 0 : index
    %c0_22 = arith.constant 0 : index
    %36 = vector.load %arg9[%c0_21, %c0_22] : memref<8x32xf32, #tpu.memory_space<vmem>>, vector<8x32xf32>
    tpu.vector_store %arg9[%c0_21, %c0_22], %26 {strides = array<i32>} : memref<8x32xf32, #tpu.memory_space<vmem>>, vector<8x32xf32>,
    %c0_23 = arith.constant 0 : index
    %c0_24 = arith.constant 0 : index
    %37 = vector.load %arg10[%c0_23, %c0_24] : memref<8x32xf32, #tpu.memory_space<vmem>>, vector<8x32xf32>
    tpu.vector_store %arg10[%c0_23, %c0_24], %24 {strides = array<i32>} : memref<8x32xf32, #tpu.memory_space<vmem>>, vector<8x32xf32>,
    return
  }
}

</mosaic_0001>

<llo_original>
// kernel: tpu_custom_call.1
$region0: #{tpu_custom_call.1}
  #allocation0 [shape = 'u32[]', space=smem, size = 0x4, offset = 0x4, fixed_abs, tag = 'smem constant byte address 0x4 - core index']
  #allocation1 [shape = 'u32[144,128]{1,0:T(1,128)}', space=vmem, size = 0x12000, scoped, tag = 'internal scratch']
  %s0 = inlined_call_operand.hbm [shape: f32[8,32], index: 0, kind: input, shape index: {}]
  %s1 = inlined_call_operand.hbm [shape: f32[8,32], index: 1, kind: input, shape index: {}]
  %s2 = inlined_call_operand.hbm [shape: f32[8,32], index: 2, kind: input, shape index: {}]
  %s3 = inlined_call_operand.hbm [shape: f32[32,128], index: 3, kind: input, shape index: {}]
  %s4 = inlined_call_operand.hbm [shape: f32[32,128], index: 4, kind: input, shape index: {}]
  %s5 = inlined_call_operand.vmem [shape: f32[1,128], index: 5, kind: input, shape index: {}]
  %s6 = inlined_call_operand.hbm [shape: f32[32,128], index: 6, kind: input, shape index: {}]
  %s7 = inlined_call_operand.vmem [shape: f32[1,128], index: 7, kind: input, shape index: {}]
  %s8 = inlined_call_operand.hbm [shape: f32[8,128], index: 8, kind: output, shape index: {0}]
  %s9 = inlined_call_operand.hbm [shape: f32[8,32], index: 9, kind: output, shape index: {1}]
  %s10 = inlined_call_operand.hbm [shape: f32[8,32], index: 10, kind: output, shape index: {2}]
  %11 = xla_tuple %s8, %s9, %s10
  %s12 = sld [smem:[#allocation0]]
  $region82: #{tpu_custom_call.1} parent=0
    _
  %s14 = ssub.s32 1, %s12
  %s15 = scalar_select 0, %s14, %s12
  $region1: #{tpu_custom_call.1} parent=0
    #allocation2 [shape = 'u8[4096]{0}', space=vmem, size = 0x1000, scoped, tag = 'input window, operand 0, single buffered']
    #allocation3 [shape = 's32[1]{0}', space=sflag, size = 0x4, scoped, tag = 'scoped memory for tpu_custom_call.1']
    #allocation4 [shape = 's32[1]{0}', space=sflag, size = 0x4, scoped, tag = 'scoped memory for tpu_custom_call.1']
    #allocation5 [shape = 'u8[4096]{0}', space=vmem, size = 0x1000, scoped, tag = 'input window, operand 1, single buffered']
    #allocation6 [shape = 's32[1]{0}', space=sflag, size = 0x4, scoped, tag = 'scoped memory for tpu_custom_call.1']
    #allocation7 [shape = 'u8[4096]{0}', space=vmem, size = 0x1000, scoped, tag = 'input window, operand 2, single buffered']
    #allocation8 [shape = 'u8[16384]{0}', space=vmem, size = 0x4000, scoped, tag = 'input window, operand 3, single buffered']
    #allocation9 [shape = 's32[1]{0}', space=sflag, size = 0x4, scoped, tag = 'scoped memory for tpu_custom_call.1']
    #allocation10 [shape = 'u8[16384]{0}', space=vmem, size = 0x4000, scoped, tag = 'input window, operand 4, single buffered']
    #allocation11 [shape = 'u8[16384]{0}', space=vmem, size = 0x4000, scoped, tag = 'input window, operand 6, single buffered']
    #allocation12 [shape = 's32[1]{0}', space=sflag, size = 0x4, scoped, tag = 'scoped memory for tpu_custom_call.1']
    #allocation13 [shape = 'u8[4096]{0}', space=vmem, size = 0x1000, scoped, tag = 'output window, operand 0, single buffered']
    #allocation14 [shape = 'u8[4096]{0}', space=vmem, size = 0x1000, scoped, tag = 'output window, operand 1, single buffered']
    #allocation15 [shape = 's32[1]{0}', space=sflag, size = 0x4, scoped, tag = 'scoped memory for tpu_custom_call.1']
    #allocation16 [shape = 'u8[4096]{0}', space=vmem, size = 0x1000, scoped, tag = 'output window, operand 2, single buffered']
    %16 = vsyncpa [#allocation3], 0
    %17 = vsyncpa [#allocation6], 0
    %18 = vsyncpa [#allocation9], 0
    %19 = vsyncpa [#allocation12], 0
    %20 = vsyncpa [#allocation4], 0
    %21 = vsyncpa [#allocation15], 0
    // Predicated region
    $region2: #{tpu_custom_call.1} parent=1 // pred_check
      _
    $region3: #{tpu_custom_call.1} parent=1 // pred_check_branch
      %23 = sbr.rel (0) target = $region5
    $region4: #{tpu_custom_call.1} parent=1 // pred_region
      %s25 = ssub.s32 128, 128
      %26 = vsyncadd [#allocation3], %s25
      %s28 = sshll.u32 [#allocation2], 4
      %s29 = int_to_ptr.vmem [resolvable:$true] %s28
      %31 = dma.hbm_to_vmem [thread:$0]  %s0, 128, %s29, [#allocation3]
    $region5: #{tpu_custom_call.1} parent=1 // pred_fallthru
      _
    // Predicated region
    $region6: #{tpu_custom_call.1} parent=1 // pred_check
      _
    $region7: #{tpu_custom_call.1} parent=1 // pred_check_branch
      %33 = sbr.rel (0) target = $region9
    $region8: #{tpu_custom_call.1} parent=1 // pred_region
      %s35 = ssub.s32 128, 128
      %36 = vsyncadd [#allocation6], %s35
      %s38 = sshll.u32 [#allocation5], 4
      %s39 = int_to_ptr.vmem [resolvable:$true] %s38
      %41 = dma.hbm_to_vmem [thread:$0]  %s1, 128, %s39, [#allocation6]
    $region9: #{tpu_custom_call.1} parent=1 // pred_fallthru
      _
    // Predicated region
    $region10: #{tpu_custom_call.1} parent=1 // pred_check
      _
    $region11: #{tpu_custom_call.1} parent=1 // pred_check_branch
      %43 = sbr.rel (0) target = $region13
    $region12: #{tpu_custom_call.1} parent=1 // pred_region
      %s45 = ssub.s32 128, 128
      %46 = vsyncadd [#allocation6], %s45
      %s48 = sshll.u32 [#allocation7], 4
      %s49 = int_to_ptr.vmem [resolvable:$true] %s48
      %51 = dma.hbm_to_vmem [thread:$0]  %s2, 128, %s49, [#allocation6]
    $region13: #{tpu_custom_call.1} parent=1 // pred_fallthru
      _
    // Predicated region
    $region14: #{tpu_custom_call.1} parent=1 // pred_check
      _
    $region15: #{tpu_custom_call.1} parent=1 // pred_check_branch
      %53 = sbr.rel (0) target = $region17
    $region16: #{tpu_custom_call.1} parent=1 // pred_region
      %s55 = ssub.s32 512, 512
      %56 = vsyncadd [#allocation9], %s55
      %s57 = sshll.u32 [#allocation8], 4
      %s58 = int_to_ptr.vmem [resolvable:$true] %s57
      %63 = dma.hbm_to_vmem [thread:$0]  %s3, 512, %s58, [#allocation9], 128, 128, 8
    $region17: #{tpu_custom_call.1} parent=1 // pred_fallthru
      _
    // Predicated region
    $region18: #{tpu_custom_call.1} parent=1 // pred_check
      _
    $region19: #{tpu_custom_call.1} parent=1 // pred_check_branch
      %65 = sbr.rel (0) target = $region21
    $region20: #{tpu_custom_call.1} parent=1 // pred_region
      %s67 = ssub.s32 512, 512
      %68 = vsyncadd [#allocation9], %s67
      %s69 = sshll.u32 [#allocation10], 4
      %s70 = int_to_ptr.vmem [resolvable:$true] %s69
      %75 = dma.hbm_to_vmem [thread:$0]  %s4, 512, %s70, [#allocation9], 128, 128, 8
    $region21: #{tpu_custom_call.1} parent=1 // pred_fallthru
      _
    // Predicated region
    $region22: #{tpu_custom_call.1} parent=1 // pred_check
      _
    $region23: #{tpu_custom_call.1} parent=1 // pred_check_branch
      %77 = sbr.rel (0) target = $region25
    $region24: #{tpu_custom_call.1} parent=1 // pred_region
      _
    $region25: #{tpu_custom_call.1} parent=1 // pred_fallthru
      _
    // Predicated region
    $region26: #{tpu_custom_call.1} parent=1 // pred_check
      _
    $region27: #{tpu_custom_call.1} parent=1 // pred_check_branch
      %79 = sbr.rel (0) target = $region29
    $region28: #{tpu_custom_call.1} parent=1 // pred_region
      %s81 = ssub.s32 512, 512
      %82 = vsyncadd [#allocation12], %s81
      %s83 = sshll.u32 [#allocation11], 4
      %s84 = int_to_ptr.vmem [resolvable:$true] %s83
      %89 = dma.hbm_to_vmem [thread:$0]  %s6, 512, %s84, [#allocation12], 128, 128, 8
    $region29: #{tpu_custom_call.1} parent=1 // pred_fallthru
      _
    // Predicated region
    $region30: #{tpu_custom_call.1} parent=1 // pred_check
      _
    $region31: #{tpu_custom_call.1} parent=1 // pred_check_branch
      %91 = sbr.rel (0) target = $region33
    $region32: #{tpu_custom_call.1} parent=1 // pred_region
      _
    $region33: #{tpu_custom_call.1} parent=1 // pred_fallthru
      _
    // Predicated region
    $region34: #{tpu_custom_call.1} parent=1 // pred_check
      _
    $region35: #{tpu_custom_call.1} parent=1 // pred_check_branch
      %93 = sbr.rel (0) target = $region37
    $region36: #{tpu_custom_call.1} parent=1 // pred_region
      %94 = dma.done [#allocation3], 128
    $region37: #{tpu_custom_call.1} parent=1 // pred_fallthru
      _
    // Predicated region
    $region38: #{tpu_custom_call.1} parent=1 // pred_check
      _
    $region39: #{tpu_custom_call.1} parent=1 // pred_check_branch
      %96 = sbr.rel (0) target = $region41
    $region40: #{tpu_custom_call.1} parent=1 // pred_region
      %97 = dma.done [#allocation6], 128
    $region41: #{tpu_custom_call.1} parent=1 // pred_fallthru
      _
    // Predicated region
    $region42: #{tpu_custom_call.1} parent=1 // pred_check
      _
    $region43: #{tpu_custom_call.1} parent=1 // pred_check_branch
      %99 = sbr.rel (0) target = $region45
    $region44: #{tpu_custom_call.1} parent=1 // pred_region
      %100 = dma.done [#allocation6], 128
    $region45: #{tpu_custom_call.1} parent=1 // pred_fallthru
      _
    // Predicated region
    $region46: #{tpu_custom_call.1} parent=1 // pred_check
      _
    $region47: #{tpu_custom_call.1} parent=1 // pred_check_branch
      %102 = sbr.rel (0) target = $region49
    $region48: #{tpu_custom_call.1} parent=1 // pred_region
      %103 = dma.done [#allocation9], 512
    $region49: #{tpu_custom_call.1} parent=1 // pred_fallthru
      _
    // Predicated region
    $region50: #{tpu_custom_call.1} parent=1 // pred_check
      _
    $region51: #{tpu_custom_call.1} parent=1 // pred_check_branch
      %105 = sbr.rel (0) target = $region53
    $region52: #{tpu_custom_call.1} parent=1 // pred_region
      %106 = dma.done [#allocation9], 512
    $region53: #{tpu_custom_call.1} parent=1 // pred_fallthru
      _
    // Predicated region
    $region54: #{tpu_custom_call.1} parent=1 // pred_check
      _
    $region55: #{tpu_custom_call.1} parent=1 // pred_check_branch
      %108 = sbr.rel (0) target = $region57
    $region56: #{tpu_custom_call.1} parent=1 // pred_region
      %109 = dma.done [#allocation12], 512
    $region57: #{tpu_custom_call.1} parent=1 // pred_fallthru
      _
    %v110 = vld [vmem:[#allocation2] sm:$0xff]
    %v111 = vld [vmem:[#allocation8] sm:$0xff]
    %v112 = vld [vmem:[#allocation8 + $0x8] sm:$0xff]
    %v113 = vld [vmem:[#allocation8 + $0x10] sm:$0xff]
    %v114 = vld [vmem:[#allocation8 + $0x18] sm:$0xff]
    %v115 = vld [vmem:[#allocation5] sm:$0xff]
    %v116 = vld [vmem:[#allocation10] sm:$0xff]
    %v117 = vld [vmem:[#allocation10 + $0x8] sm:$0xff]
    %v118 = vld [vmem:[#allocation10 + $0x10] sm:$0xff]
    %v119 = vld [vmem:[#allocation10 + $0x18] sm:$0xff]
    %vm120 = vcmask 261120
    %v122 = vsel %vm120, %v115, 0
    %124 = vmatprep.subr.mxu0 0.0
    %125 = vmatpush1.msra.mxu0 %v116
    %126 = vmatprep.subr.mxu0 0.0
    %127 = vmatpush1.msra.mxu0 %v117
    %128 = vmatprep.subr.mxu0 0.0
    %129 = vmatpush1.msra.mxu0 %v118
    %130 = vmatprep.subr.mxu0 0.0
    %131 = vmatpush1.msra.mxu0 %v119
    %132 = vmatprep.subr.mxu0 0.0
    %133 = vmatpush1.msra.mxu0 0.0
    %134 = vmatprep.subr.mxu0 0.0
    %135 = vmatpush1.msra.mxu0 0.0
    %136 = vmatprep.subr.mxu0 0.0
    %137 = vmatpush1.msra.mxu0 0.0
    %138 = vmatprep.subr.mxu0 0.0
    %139 = vmatpush1.msra.mxu0 0.0
    %140 = vmatprep.subr.mxu0 0.0
    %141 = vmatpush1.msra.mxu0 0.0
    %142 = vmatprep.subr.mxu0 0.0
    %143 = vmatpush1.msra.mxu0 0.0
    %144 = vmatprep.subr.mxu0 0.0
    %145 = vmatpush1.msra.mxu0 0.0
    %146 = vmatprep.subr.mxu0 0.0
    %147 = vmatpush1.msra.mxu0 0.0
    %148 = vmatprep.subr.mxu0 0.0
    %149 = vmatpush1.msra.mxu0 0.0
    %150 = vmatprep.subr.mxu0 0.0
    %151 = vmatpush1.msra.mxu0 0.0
    %152 = vmatprep.subr.mxu0 0.0
    %153 = vmatpush1.msra.mxu0 0.0
    %154 = vmatprep.subr.mxu0 0.0
    %155 = vmatpush1.msra.mxu0 0.0
    %156 = vmatprep.subr.mxu0 0.0
    %157 = vmatpush1.msra.mxu0 0.0
    %158 = vmatprep.subr.mxu0 0.0
    %159 = vmatpush1.msra.mxu0 0.0
    %160 = vmatprep.subr.mxu0 0.0
    %161 = vmatpush1.msra.mxu0 0.0
    %162 = vmatprep.subr.mxu0 0.0
    %163 = vmatpush1.msra.mxu0 0.0
    %164 = vmatprep.subr.mxu0 0.0
    %165 = vmatpush1.msra.mxu0 0.0
    %166 = vmatprep.subr.mxu0 0.0
    %167 = vmatpush1.msra.mxu0 0.0
    %168 = vmatprep.subr.mxu0 0.0
    %169 = vmatpush1.msra.mxu0 0.0
    %170 = vmatprep.subr.mxu0 0.0
    %171 = vmatpush1.msra.mxu0 0.0
    %172 = vmatprep.subr.mxu0 0.0
    %173 = vmatpush1.msra.mxu0 0.0
    %174 = vmatprep.subr.mxu0 0.0
    %175 = vmatpush1.msra.mxu0 0.0
    %176 = vmatprep.subr.mxu0 0.0
    %177 = vmatpush1.msra.mxu0 0.0
    %178 = vmatprep.subr.mxu0 0.0
    %179 = vmatpush1.msra.mxu0 0.0
    %180 = vmatprep.subr.mxu0 0.0
    %181 = vmatpush1.msra.mxu0 0.0
    %182 = vmatprep.subr.mxu0 0.0
    %183 = vmatpush1.msra.mxu0 0.0
    %184 = vmatprep.subr.mxu0 0.0
    %185 = vmatpush1.msra.mxu0 0.0
    %186 = vmatprep.subr.mxu0 0.0
    %187 = vmatpush1.msra.mxu0 0.0
    %188 = vmatprep.mubr.f32.mxu0 0.0
    %189 = vmatmul.mubr.f32.gmra.mrb[0].mxu0 %v122
    %v190 = vpop.f32.mrb[0].mxu0
    %v191 = vadd.f32 0.0, %v190
    %v192 = vpop.f32.mrb[0].mxu0
    %193 = vdwg.mxu0
    %v195 = vsel %vm120, %v110, 0
    %197 = vmatprep.subr.mxu0 0.0
    %198 = vmatpush1.msra.mxu0 %v111
    %199 = vmatprep.subr.mxu0 0.0
    %200 = vmatpush1.msra.mxu0 %v112
    %201 = vmatprep.subr.mxu0 0.0
    %202 = vmatpush1.msra.mxu0 %v113
    %203 = vmatprep.subr.mxu0 0.0
    %204 = vmatpush1.msra.mxu0 %v114
    %205 = vmatprep.subr.mxu0 0.0
    %206 = vmatpush1.msra.mxu0 0.0
    %207 = vmatprep.subr.mxu0 0.0
    %208 = vmatpush1.msra.mxu0 0.0
    %209 = vmatprep.subr.mxu0 0.0
    %210 = vmatpush1.msra.mxu0 0.0
    %211 = vmatprep.subr.mxu0 0.0
    %212 = vmatpush1.msra.mxu0 0.0
    %213 = vmatprep.subr.mxu0 0.0
    %214 = vmatpush1.msra.mxu0 0.0
    %215 = vmatprep.subr.mxu0 0.0
    %216 = vmatpush1.msra.mxu0 0.0
    %217 = vmatprep.subr.mxu0 0.0
    %218 = vmatpush1.msra.mxu0 0.0
    %219 = vmatprep.subr.mxu0 0.0
    %220 = vmatpush1.msra.mxu0 0.0
    %221 = vmatprep.subr.mxu0 0.0
    %222 = vmatpush1.msra.mxu0 0.0
    %223 = vmatprep.subr.mxu0 0.0
    %224 = vmatpush1.msra.mxu0 0.0
    %225 = vmatprep.subr.mxu0 0.0
    %226 = vmatpush1.msra.mxu0 0.0
    %227 = vmatprep.subr.mxu0 0.0
    %228 = vmatpush1.msra.mxu0 0.0
    %229 = vmatprep.subr.mxu0 0.0
    %230 = vmatpush1.msra.mxu0 0.0
    %231 = vmatprep.subr.mxu0 0.0
    %232 = vmatpush1.msra.mxu0 0.0
    %233 = vmatprep.subr.mxu0 0.0
    %234 = vmatpush1.msra.mxu0 0.0
    %235 = vmatprep.subr.mxu0 0.0
    %236 = vmatpush1.msra.mxu0 0.0
    %237 = vmatprep.subr.mxu0 0.0
    %238 = vmatpush1.msra.mxu0 0.0
    %239 = vmatprep.subr.mxu0 0.0
    %240 = vmatpush1.msra.mxu0 0.0
    %241 = vmatprep.subr.mxu0 0.0
    %242 = vmatpush1.msra.mxu0 0.0
    %243 = vmatprep.subr.mxu0 0.0
    %244 = vmatpush1.msra.mxu0 0.0
    %245 = vmatprep.subr.mxu0 0.0
    %246 = vmatpush1.msra.mxu0 0.0
    %247 = vmatprep.subr.mxu0 0.0
    %248 = vmatpush1.msra.mxu0 0.0
    %249 = vmatprep.subr.mxu0 0.0
    %250 = vmatpush1.msra.mxu0 0.0
    %251 = vmatprep.subr.mxu0 0.0
    %252 = vmatpush1.msra.mxu0 0.0
    %253 = vmatprep.subr.mxu0 0.0
    %254 = vmatpush1.msra.mxu0 0.0
    %255 = vmatprep.subr.mxu0 0.0
    %256 = vmatpush1.msra.mxu0 0.0
    %257 = vmatprep.subr.mxu0 0.0
    %258 = vmatpush1.msra.mxu0 0.0
    %259 = vmatprep.subr.mxu0 0.0
    %260 = vmatpush1.msra.mxu0 0.0
    %261 = vmatprep.mubr.f32.mxu0 0.0
    %262 = vmatmul.mubr.f32.gmra.mrb[0].mxu0 %v195
    %v263 = vpop.f32.mrb[0].mxu0
    %v264 = vadd.f32 %v191, %v263
    %v265 = vpop.f32.mrb[0].mxu0
    %266 = vdwg.mxu0
    %v267 = vld [vmem:[%s5] sm:$0x1]
    %v269 = vlaneseq
    %v270 = vshrl.u32 %v269, 7
    %v271 = vsub.s32 0, %v270
    %v272 = vrot.slane %v267, %v271
    %v274 = vadd.f32 %v264, %v272
    %v275 = vxor.u32 %v274, 2147483648
    %v276 = vmul.f32 %v275, 1.442695
    %v277 = vpow.pop %v276
    %v278 = vadd.f32 %v277, 1.0
    %v279 = vrcp.pop %v278
    %v280 = vmul.f32 1.0, %v279
    %v281 = vtanh.pop %v274
    %v282 = vld [vmem:[#allocation7] sm:$0xff]
    %284 = vrot.lane.b32.xlu0 %v282, 32
    %v285 = vpop.permute.xlu0 %284
    %v287 = vmul.f32 %v280, %v285
    %289 = vrot.lane.b32.xlu0 %v281, 32
    %v290 = vpop.permute.xlu0 %289
    %v292 = vmul.f32 %v280, %v290
    %294 = vrot.lane.b32.xlu0 %v292, 32
    %v295 = vpop.permute.xlu0 %294
    %v297 = vadd.f32 %v287, %v295
    %v298 = vtanh.pop %v297
    %300 = vrot.lane.b32.xlu0 %v298, 32
    %v301 = vpop.permute.xlu0 %300
    %v303 = vmul.f32 %v280, %v301
    %v304 = vld [vmem:[#allocation11] sm:$0xff]
    %v305 = vld [vmem:[#allocation11 + $0x8] sm:$0xff]
    %v306 = vld [vmem:[#allocation11 + $0x10] sm:$0xff]
    %v307 = vld [vmem:[#allocation11 + $0x18] sm:$0xff]
    %v308 = vld [vmem:[%s7] sm:$0x1]
    %v310 = vlaneseq
    %v311 = vshrl.u32 %v310, 7
    %v312 = vsub.s32 0, %v311
    %v313 = vrot.slane %v308, %v312
    %316 = vrot.lane.b32.xlu0 %v303, 64
    %v317 = vpop.permute.xlu0 %316
    %v318 = vsel %vm120, %v317, 0
    %320 = vmatprep.subr.mxu0 0.0
    %321 = vmatpush1.msra.mxu0 %v304
    %322 = vmatprep.subr.mxu0 0.0
    %323 = vmatpush1.msra.mxu0 %v305
    %324 = vmatprep.subr.mxu0 0.0
    %325 = vmatpush1.msra.mxu0 %v306
    %326 = vmatprep.subr.mxu0 0.0
    %327 = vmatpush1.msra.mxu0 %v307
    %328 = vmatprep.subr.mxu0 0.0
    %329 = vmatpush1.msra.mxu0 0.0
    %330 = vmatprep.subr.mxu0 0.0
    %331 = vmatpush1.msra.mxu0 0.0
    %332 = vmatprep.subr.mxu0 0.0
    %333 = vmatpush1.msra.mxu0 0.0
    %334 = vmatprep.subr.mxu0 0.0
    %335 = vmatpush1.msra.mxu0 0.0
    %336 = vmatprep.subr.mxu0 0.0
    %337 = vmatpush1.msra.mxu0 0.0
    %338 = vmatprep.subr.mxu0 0.0
    %339 = vmatpush1.msra.mxu0 0.0
    %340 = vmatprep.subr.mxu0 0.0
    %341 = vmatpush1.msra.mxu0 0.0
    %342 = vmatprep.subr.mxu0 0.0
    %343 = vmatpush1.msra.mxu0 0.0
    %344 = vmatprep.subr.mxu0 0.0
    %345 = vmatpush1.msra.mxu0 0.0
    %346 = vmatprep.subr.mxu0 0.0
    %347 = vmatpush1.msra.mxu0 0.0
    %348 = vmatprep.subr.mxu0 0.0
    %349 = vmatpush1.msra.mxu0 0.0
    %350 = vmatprep.subr.mxu0 0.0
    %351 = vmatpush1.msra.mxu0 0.0
    %352 = vmatprep.subr.mxu0 0.0
    %353 = vmatpush1.msra.mxu0 0.0
    %354 = vmatprep.subr.mxu0 0.0
    %355 = vmatpush1.msra.mxu0 0.0
    %356 = vmatprep.subr.mxu0 0.0
    %357 = vmatpush1.msra.mxu0 0.0
    %358 = vmatprep.subr.mxu0 0.0
    %359 = vmatpush1.msra.mxu0 0.0
    %360 = vmatprep.subr.mxu0 0.0
    %361 = vmatpush1.msra.mxu0 0.0
    %362 = vmatprep.subr.mxu0 0.0
    %363 = vmatpush1.msra.mxu0 0.0
    %364 = vmatprep.subr.mxu0 0.0
    %365 = vmatpush1.msra.mxu0 0.0
    %366 = vmatprep.subr.mxu0 0.0
    %367 = vmatpush1.msra.mxu0 0.0
    %368 = vmatprep.subr.mxu0 0.0
    %369 = vmatpush1.msra.mxu0 0.0
    %370 = vmatprep.subr.mxu0 0.0
    %371 = vmatpush1.msra.mxu0 0.0
    %372 = vmatprep.subr.mxu0 0.0
    %373 = vmatpush1.msra.mxu0 0.0
    %374 = vmatprep.subr.mxu0 0.0
    %375 = vmatpush1.msra.mxu0 0.0
    %376 = vmatprep.subr.mxu0 0.0
    %377 = vmatpush1.msra.mxu0 0.0
    %378 = vmatprep.subr.mxu0 0.0
    %379 = vmatpush1.msra.mxu0 0.0
    %380 = vmatprep.subr.mxu0 0.0
    %381 = vmatpush1.msra.mxu0 0.0
    %382 = vmatprep.subr.mxu0 0.0
    %383 = vmatpush1.msra.mxu0 0.0
    %384 = vmatprep.mubr.f32.mxu0 0.0
    %385 = vmatmul.mubr.f32.gmra.mrb[0].mxu0 %v318
    %v386 = vpop.f32.mrb[0].mxu0
    %v387 = vadd.f32 %v313, %v386
    %v388 = vpop.f32.mrb[0].mxu0
    %389 = vdwg.mxu0
    %v390 = vtanh.pop %v387
    %v391 = vmul.f32 %v390, 2.5
    %392 = vst [vmem:[#allocation13] sm:$0xff] %v391
    %394 = vst.msk [vmem:[#allocation14] sm:$0xff] %vm120, %v317
    %396 = vrot.lane.b32.xlu0 %v297, 96
    %v397 = vpop.permute.xlu0 %396
    %399 = vst.msk [vmem:[#allocation16] sm:$0xff] %vm120, %v397
    // Predicated region
    $region58: #{tpu_custom_call.1} parent=1 // pred_check
      _
    $region59: #{tpu_custom_call.1} parent=1 // pred_check_branch
      %401 = sbr.rel (0) target = $region61
    $region60: #{tpu_custom_call.1} parent=1 // pred_region
      %s403 = ssub.s32 128, 128
      %404 = vsyncadd [#allocation4], %s403
      %s406 = sshll.u32 [#allocation13], 4
      %s407 = int_to_ptr.vmem [resolvable:$true] %s406
      %409 = dma.vmem_to_hbm [thread:$0]  %s407, 128, %s8, [#allocation4]
    $region61: #{tpu_custom_call.1} parent=1 // pred_fallthru
      _
    // Predicated region
    $region62: #{tpu_custom_call.1} parent=1 // pred_check
      _
    $region63: #{tpu_custom_call.1} parent=1 // pred_check_branch
      %411 = sbr.rel (0) target = $region65
    $region64: #{tpu_custom_call.1} parent=1 // pred_region
      %s413 = ssub.s32 128, 128
      %414 = vsyncadd [#allocation15], %s413
      %s416 = sshll.u32 [#allocation14], 4
      %s417 = int_to_ptr.vmem [resolvable:$true] %s416
      %419 = dma.vmem_to_hbm [thread:$0]  %s417, 128, %s9, [#allocation15]
    $region65: #{tpu_custom_call.1} parent=1 // pred_fallthru
      _
    // Predicated region
    $region66: #{tpu_custom_call.1} parent=1 // pred_check
      _
    $region67: #{tpu_custom_call.1} parent=1 // pred_check_branch
      %421 = sbr.rel (0) target = $region69
    $region68: #{tpu_custom_call.1} parent=1 // pred_region
      %s423 = ssub.s32 128, 128
      %424 = vsyncadd [#allocation15], %s423
      %s426 = sshll.u32 [#allocation16], 4
      %s427 = int_to_ptr.vmem [resolvable:$true] %s426
      %429 = dma.vmem_to_hbm [thread:$0]  %s427, 128, %s10, [#allocation15]
    $region69: #{tpu_custom_call.1} parent=1 // pred_fallthru
      _
    // Predicated region
    $region70: #{tpu_custom_call.1} parent=1 // pred_check
      _
    $region71: #{tpu_custom_call.1} parent=1 // pred_check_branch
      %431 = sbr.rel (0) target = $region73
    $region72: #{tpu_custom_call.1} parent=1 // pred_region
      %432 = dma.done [#allocation4], 128
    $region73: #{tpu_custom_call.1} parent=1 // pred_fallthru
      _
    // Predicated region
    $region74: #{tpu_custom_call.1} parent=1 // pred_check
      _
    $region75: #{tpu_custom_call.1} parent=1 // pred_check_branch
      %434 = sbr.rel (0) target = $region77
    $region76: #{tpu_custom_call.1} parent=1 // pred_region
      %435 = dma.done [#allocation15], 128
    $region77: #{tpu_custom_call.1} parent=1 // pred_fallthru
      _
    // Predicated region
    $region78: #{tpu_custom_call.1} parent=1 // pred_check
      _
    $region79: #{tpu_custom_call.1} parent=1 // pred_check_branch
      %437 = sbr.rel (0) target = $region81
    $region80: #{tpu_custom_call.1} parent=1 // pred_region
      %438 = dma.done [#allocation15], 128
    $region81: #{tpu_custom_call.1} parent=1 // pred_fallthru
      _
    %439 = vsyncpa [#allocation3], 1
    %440 = vsyncpa [#allocation6], 1
    %441 = vsyncpa [#allocation9], 1
    %442 = vsyncpa [#allocation12], 1
    %443 = vsyncpa [#allocation4], 1
    %444 = vsyncpa [#allocation15], 1

</llo_original>
